<compile_context>
chip_gen: v7x
topology: tpu7x:2x2x1
jax: 0.10.0
libtpu: 0.0.40
codegen_flags: <defaults>
</compile_context>

<pallas_src>
import functools
import math

import jax
import jax.numpy as jnp
from jax import lax
from jax.experimental import pallas as pl
from jax.experimental.pallas import tpu as pltpu

# Per-block element budget: ~1M elements => ~4 MiB per full-block f32 temporary.
_BLOCK_ELEM_BUDGET = 1 << 20


def _tv_kernel(x_ref, out_ref, *, h, n_valid_rows, ragged):
    """One grid step: a (TB_ROWS, W) slab of stacked image rows -> partial sums.

    x_ref:   (TB_ROWS, W) VMEM tile; TB_ROWS is a whole number of image planes.
    out_ref: (1, 8, 128) f32 tile; lane 0 carries sum(dh^2), lane 1 sum(dw^2).
    """
    tb_rows, w = x_ref.shape

    x = x_ref[...]
    if x.dtype != jnp.float32:
        # v5e has no bf16 VPU ALUs; keep all arithmetic in f32.
        x = x.astype(jnp.float32)

    if ragged:
        # Last block may extend past the end of the array; Pallas pads those
        # rows with unspecified values.  Zero them so they contribute nothing
        # (and cannot inject NaN/Inf into the sums).
        row_global = (
            pl.program_id(0) * tb_rows
            + lax.broadcasted_iota(jnp.int32, (tb_rows, w), 0)
        )
        x = jnp.where(row_global < n_valid_rows, x, 0.0)

    # Vertical diffs: row r of `dh` is the pair (r, r+1); it is a within-image
    # pair only when (r % H) != H-1.  Because the block height is a multiple of
    # H, local row indices agree with global ones mod H, and the pair spanning
    # a block boundary is exactly a masked plane-boundary pair.
    # NOTE: H == 1 or W == 1 is degenerate (PyTorch MSELoss on an empty tensor
    # returns NaN); not handled here.
    dh = x[1:, :] - x[:-1, :]                                   # (TB_ROWS-1, W)
    mask_h = (
        lax.broadcasted_iota(jnp.int32, (tb_rows - 1, w), 0) % h
    ) != (h - 1)
    dh = jnp.where(mask_h, dh, 0.0)
    sum_dh = jnp.sum(dh * dh)

    # Horizontal diffs stay inside each row; no mask needed.
    dw = x[:, 1:] - x[:, :-1]                                   # (TB_ROWS, W-1)
    sum_dw = jnp.sum(dw * dw)

    # Build the whole output tile in registers and store it with one unmasked,
    # lane-dense vst (no scalar element writes).
    lane = lax.broadcasted_iota(jnp.int32, (8, 128), 1)
    tile = jnp.where(lane == 0, sum_dh, jnp.where(lane == 1, sum_dw, 0.0))
    out_ref[...] = tile[None]


def total_variation_loss(images: jax.Array) -> jax.Array:
    """images: (B, C, H, W). Returns the scalar f32 TotalVariationLoss."""
    b, c, h, w = images.shape
    bc = b * c
    n_rows = bc * h
    x2 = images.reshape(n_rows, w)

    # ---- choose planes-per-block (tp) ----
    plane_elems = h * w
    tp = max(1, _BLOCK_ELEM_BUDGET // max(1, plane_elems))
    if bc >= 2:
        # Keep at least 2 grid steps when possible (v7x has 2 TensorCores and
        # the grid axis is marked "parallel").
        tp = min(tp, -(-bc // 2))
    # The block's row count (tp*h) must be a multiple of 8 unless it spans the
    # whole array (BlockSpec (8,128) rule on the second-to-last dim).
    g = 8 // math.gcd(h, 8)
    tp = max(g, (tp // g) * g)
    if tp >= bc:
        tp = bc  # single block covering all rows; full-extent dim is allowed
    tb_rows = tp * h
    num_blocks = -(-bc // tp)
    ragged = (bc % tp) != 0

    kernel = functools.partial(
        _tv_kernel, h=h, n_valid_rows=n_rows, ragged=ragged)

    partials = pl.pallas_call(
        kernel,
        out_shape=jax.ShapeDtypeStruct((num_blocks, 8, 128), jnp.float32),
        grid_spec=pltpu.PrefetchScalarGridSpec(
            num_scalar_prefetch=0,
            grid=(num_blocks,),
            in_specs=[pl.BlockSpec((tb_rows, w), lambda i: (i, 0))],
            out_specs=pl.BlockSpec((1, 8, 128), lambda i: (i, 0, 0)),
        ),
        compiler_params=pltpu.CompilerParams(
            dimension_semantics=("parallel",),
            vmem_limit_bytes=48 << 20,
        ),
    )(x2)

    # Tiny final reduction over per-block partial sums (plain JAX).
    sum_dh = jnp.sum(partials[:, 0, 0])
    sum_dw = jnp.sum(partials[:, 0, 1])

    # MSELoss is a mean over all elements of each difference tensor.
    n_h = bc * (h - 1) * w
    n_w = bc * h * (w - 1)
    tv_h = sum_dh / jnp.float32(n_h)
    tv_w = sum_dw / jnp.float32(n_w)
    return tv_h / jnp.float32(h) + tv_w / jnp.float32(w)


if __name__ == "__main__":
    key = jax.random.PRNGKey(0)
    B, C, H, W = 2, 4, 16, 16
    images = jax.random.normal(key, (B, C, H, W), dtype=jnp.float32)

    loss = jax.block_until_ready(total_variation_loss(images))

    # Pure-JAX reference check.
    dh = images[:, :, 1:, :] - images[:, :, :-1, :]
    dw = images[:, :, :, 1:] - images[:, :, :, :-1]
    ref = jnp.mean(dh * dh) / H + jnp.mean(dw * dw) / W

    assert jnp.allclose(loss, ref, rtol=1e-5, atol=1e-6), (loss, ref)
    print("KERNEL_OK")
</pallas_src>

<mosaic_0001>
module attributes {stable_mosaic.version = 11 : i64} {
  func.func @_tv_kernel(%arg0: i32, %arg1: memref<64x16xf32, #tpu.memory_space<vmem>>, %arg2: memref<1x8x128xf32, #tpu.memory_space<vmem>>) attributes {dimension_semantics = [#tpu.dimension_semantics<parallel>], iteration_bounds = array<i64: 2>, scalar_prefetch = 0 : i64, scratch_operands = 0 : i64, tpu.core_type = #tpu.core_type<tc>, window_params = [{transform_indices = @transform_0, window_bounds = array<i64: 64, 16>}, {transform_indices = @transform_1, window_bounds = array<i64: 1, 8, 128>}]} {
    %c0 = arith.constant 0 : index
    %c0_0 = arith.constant 0 : index
    %0 = vector.load %arg1[%c0, %c0_0] : memref<64x16xf32, #tpu.memory_space<vmem>>, vector<64x16xf32>
    %1 = vector.extract_strided_slice %0 {offsets = [1, 0], sizes = [63, 16], strides = [1, 1]} : vector<64x16xf32> to vector<63x16xf32>
    %2 = vector.extract_strided_slice %0 {offsets = [0, 0], sizes = [63, 16], strides = [1, 1]} : vector<64x16xf32> to vector<63x16xf32>
    %3 = arith.subf %1, %2 : vector<63x16xf32>
    %4 = tpu.iota {dimensions = array<i32: 0>} : vector<63x16xi32>
    %c16_i32 = arith.constant 16 : i32
    %c0_i32 = arith.constant 0 : i32
    %5 = arith.cmpi eq, %c16_i32, %c0_i32 : i32
    %c1_i32 = arith.constant 1 : i32
    %6 = arith.select %5, %c1_i32, %c16_i32 : i32
    %7 = vector.broadcast %6 : i32 to vector<63x16xi32>
    %8 = arith.remsi %4, %7 : vector<63x16xi32>
    %c0_i32_1 = arith.constant 0 : i32
    %9 = vector.broadcast %c0_i32_1 : i32 to vector<63x16xi32>
    %10 = arith.cmpi ne, %8, %9 : vector<63x16xi32>
    %c0_i32_2 = arith.constant 0 : i32
    %11 = vector.broadcast %c0_i32_2 : i32 to vector<63x16xi32>
    %12 = arith.cmpi slt, %8, %11 : vector<63x16xi32>
    %c0_i32_3 = arith.constant 0 : i32
    %13 = arith.cmpi slt, %6, %c0_i32_3 : i32
    %14 = vector.broadcast %13 : i1 to vector<63x16xi1>
    %15 = vector.broadcast %14 : vector<63x16xi1> to vector<63x16xi1>
    %16 = arith.xori %12, %15 : vector<63x16xi1>
    %17 = arith.andi %16, %10 : vector<63x16xi1>
    %18 = vector.broadcast %6 : i32 to vector<63x16xi32>
    %19 = arith.addi %8, %18 : vector<63x16xi32>
    %20 = arith.select %17, %19, %8 : vector<63x16xi1>, vector<63x16xi32>
    %c15_i32 = arith.constant 15 : i32
    %21 = vector.broadcast %c15_i32 : i32 to vector<63x16xi32>
    %22 = arith.cmpi ne, %20, %21 : vector<63x16xi32>
    %cst = arith.constant 0.000000e+00 : f32
    %23 = vector.broadcast %cst : f32 to vector<63x16xf32>
    %24 = arith.select %22, %3, %23 : vector<63x16xi1>, vector<63x16xf32>
    %25 = arith.mulf %24, %24 : vector<63x16xf32>
    %26 = vector.shape_cast %25 : vector<63x16xf32> to vector<1x63x16xf32>
    %cst_4 = arith.constant dense<0.000000e+00> : vector<1xf32>
    %27 = vector.multi_reduction <add>, %26, %cst_4 [1, 2] : vector<1x63x16xf32> to vector<1xf32>
    %28 = vector.shape_cast %27 : vector<1xf32> to vector<1x1x1xf32>
    %29 = vector.extract %28[0, 0, 0] : f32 from vector<1x1x1xf32>
    %30 = vector.extract_strided_slice %0 {offsets = [0, 1], sizes = [64, 15], strides = [1, 1]} : vector<64x16xf32> to vector<64x15xf32>
    %31 = vector.extract_strided_slice %0 {offsets = [0, 0], sizes = [64, 15], strides = [1, 1]} : vector<64x16xf32> to vector<64x15xf32>
    %32 = arith.subf %30, %31 : vector<64x15xf32>
    %33 = arith.mulf %32, %32 : vector<64x15xf32>
    %34 = vector.shape_cast %33 : vector<64x15xf32> to vector<1x64x15xf32>
    %cst_5 = arith.constant dense<0.000000e+00> : vector<1xf32>
    %35 = vector.multi_reduction <add>, %34, %cst_5 [1, 2] : vector<1x64x15xf32> to vector<1xf32>
    %36 = vector.shape_cast %35 : vector<1xf32> to vector<1x1x1xf32>
    %37 = vector.extract %36[0, 0, 0] : f32 from vector<1x1x1xf32>
    %38 = tpu.iota {dimensions = array<i32: 1>} : vector<8x128xi32>
    %c0_i32_6 = arith.constant 0 : i32
    %39 = vector.broadcast %c0_i32_6 : i32 to vector<8x128xi32>
    %40 = arith.cmpi eq, %38, %39 : vector<8x128xi32>
    %c1_i32_7 = arith.constant 1 : i32
    %41 = vector.broadcast %c1_i32_7 : i32 to vector<8x128xi32>
    %42 = arith.cmpi eq, %38, %41 : vector<8x128xi32>
    %cst_8 = arith.constant 0.000000e+00 : f32
    %43 = vector.broadcast %37 : f32 to vector<8x128xf32>
    %44 = vector.broadcast %cst_8 : f32 to vector<8x128xf32>
    %45 = arith.select %42, %43, %44 : vector<8x128xi1>, vector<8x128xf32>
    %46 = vector.broadcast %29 : f32 to vector<8x128xf32>
    %47 = arith.select %40, %46, %45 : vector<8x128xi1>, vector<8x128xf32>
    %48 = vector.shape_cast %47 : vector<8x128xf32> to vector<1x8x128xf32>
    %c0_9 = arith.constant 0 : index
    %c0_10 = arith.constant 0 : index
    %c0_11 = arith.constant 0 : index
    %49 = vector.load %arg2[%c0_9, %c0_10, %c0_11] : memref<1x8x128xf32, #tpu.memory_space<vmem>>, vector<1x8x128xf32>
    tpu.vector_store %arg2[%c0_9, %c0_10, %c0_11], %48 {strides = array<i32>} : memref<1x8x128xf32, #tpu.memory_space<vmem>>, vector<1x8x128xf32>,
    return
  }
  func.func @transform_0(%arg0: i32) -> (i32, i32) {
    %c0_i32 = arith.constant 0 : i32
    %c0_i32_0 = arith.constant 0 : i32
    return %arg0, %c0_i32 : i32, i32
  }
  func.func @transform_1(%arg0: i32) -> (i32, i32, i32) {
    %c0_i32 = arith.constant 0 : i32
    %c0_i32_0 = arith.constant 0 : i32
    %c0_i32_1 = arith.constant 0 : i32
    return %arg0, %c0_i32, %c0_i32_0 : i32, i32, i32
  }
}

</mosaic_0001>

<llo_original>
// kernel: tpu_custom_call.1
$region0: #{tpu_custom_call.1}
  #allocation0 [shape = 'u32[]', space=smem, size = 0x4, offset = 0x4, fixed_abs, tag = 'smem constant byte address 0x4 - core index']
  #allocation1 [shape = 'u32[144,128]{1,0:T(1,128)}', space=vmem, size = 0x12000, scoped, tag = 'internal scratch']
  %s0 = inlined_call_operand.vmem [shape: f32[128,16], index: 0, kind: input, shape index: {}]
  %s1 = inlined_call_operand.hbm [shape: f32[2,8,128], index: 1, kind: output, shape index: {}]
  %s2 = sld [smem:[#allocation0]]
  $region37: #{tpu_custom_call.1} parent=0
    _
  %s4 = ssub.s32 1, %s2
  %s5 = scalar_select 0, %s4, %s2
  $region1: #{tpu_custom_call.1} parent=0
    #allocation2 [shape = 'u8[8192]{0}', space=vmem, size = 0x2000, scoped, tag = 'output window, operand 0']
    #allocation3 [shape = 's32[2]{0}', space=sflag, size = 0x8, scoped, tag = 'scoped memory for tpu_custom_call.1']
    %6 = vsyncpa [#allocation3], 0
    %s7 = scalar_lea.sflag [#allocation3], 1
    %8 = vsyncpa %s7, 0
    loop: start=0, step=1, limit=4
    $region2: #{tpu_custom_call.1} parent=1 // loop_pre_header
      _
    $region3: #{tpu_custom_call.1} parent=1 // loop_header
      %s10 = sphi 0, %s14
      %p11 = scmp.ge.s32.totalorder %s10, 4
      %s20 = sphi 0, %s22
      %s23 = sphi 0, %s20
      %s24 = sphi 0, %s23
      %s40 = sphi 0, %s24
      %s46 = sphi 0, %s48
      %s49 = sphi 0, %s46
      %s50 = sphi 0, %s49
      %s66 = sphi 0, %s50
    $region4: #{tpu_custom_call.1} parent=1 // loop_header_branch
      %13 = sbr.rel (%p11) target = $region8
    $region5: #{tpu_custom_call.1} parent=1 // loop_body
      %s15 = ssub.s32 %s10, 1
      %s16 = ssub.s32 %s10, 2
      %s17 = sadd.s32 %s10, 1
      %s18 = ssub.s32 %s10, %s17
      %p19 = scmp.eq.s32.totalorder %s18, 0
      %s21 = sadd.s32 %s20, 1
      %s22 = scalar_select %p19, %s20, %s21
      %p25 = pneg %p19
      %p26 = scmp.eq.s32.totalorder %s10, 1
      %p27 = por %p25, %p26
      %p28 = scmp.ne.s32.totalorder %s20, %s23
      %p29 = scmp.eq.s32.totalorder %s10, 0
      %p30 = por %p28, %p29
      %p31 = scmp.ne.s32.totalorder %s20, %s23
      %p32 = scmp.eq.s32.totalorder %s15, 1
      %p33 = por %p31, %p32
      %p34 = scmp.ne.s32.totalorder %s23, %s24
      %p35 = scmp.eq.s32.totalorder %s15, 0
      %p36 = por %p34, %p35
      %p37 = scmp.ne.s32.totalorder %s23, %s24
      %p38 = scmp.eq.s32.totalorder %s16, 1
      %p39 = por %p37, %p38
      %p41 = scmp.ne.s32.totalorder %s24, %s40
      %p42 = scmp.eq.s32.totalorder %s16, 0
      %p43 = por %p41, %p42
      %s44 = ssub.s32 %s10, %s17
      %p45 = scmp.eq.s32.totalorder %s44, 0
      %s47 = sadd.s32 %s46, 1
      %s48 = scalar_select %p45, %s46, %s47
      %p51 = pneg %p45
      %p52 = scmp.eq.s32.totalorder %s10, 1
      %p53 = por %p51, %p52
      %p54 = scmp.ne.s32.totalorder %s46, %s49
      %p55 = scmp.eq.s32.totalorder %s10, 0
      %p56 = por %p54, %p55
      %p57 = scmp.ne.s32.totalorder %s46, %s49
      %p58 = scmp.eq.s32.totalorder %s15, 1
      %p59 = por %p57, %p58
      %p60 = scmp.ne.s32.totalorder %s49, %s50
      %p61 = scmp.eq.s32.totalorder %s15, 0
      %p62 = por %p60, %p61
      %p63 = scmp.ne.s32.totalorder %s49, %s50
      %p64 = scmp.eq.s32.totalorder %s16, 1
      %p65 = por %p63, %p64
      %p67 = scmp.ne.s32.totalorder %s50, %s66
      %p68 = scmp.eq.s32.totalorder %s16, 0
      %p69 = por %p67, %p68
      %p70 = scmp.le.s32.totalorder 1, %s10
      %p71 = scmp.lt.s32.totalorder %s10, 3
      %p72 = pnand %p70, %p71
      %p73 = pneg %p72
      // Predicated region
      $region9: #{tpu_custom_call.1} parent=5 // pred_check
        _
      $region10: #{tpu_custom_call.1} parent=5 // pred_check_branch
        %75 = sbr.rel (%p72) target = $region12
      $region11: #{tpu_custom_call.1} parent=5 // pred_region
        %s76 = ssub.s32 %s10, 1
      $region12: #{tpu_custom_call.1} parent=5 // pred_fallthru
        _
      %p77 = scmp.lt.s32.totalorder %s10, 2
      // Predicated region
      $region13: #{tpu_custom_call.1} parent=5 // pred_check
        %p78 = pneg %p77
      $region14: #{tpu_custom_call.1} parent=5 // pred_check_branch
        %80 = sbr.rel (%p78) target = $region16
      $region15: #{tpu_custom_call.1} parent=5 // pred_region
        // Predicated region
        $region17: #{tpu_custom_call.1} parent=15 // pred_check
          %p81 = pneg %p30
        $region18: #{tpu_custom_call.1} parent=15 // pred_check_branch
          %83 = sbr.rel (%p81) target = $region20
        $region19: #{tpu_custom_call.1} parent=15 // pred_region
          %s84 = smul.u32 8, %s10
          %p85 = scmp.lt.s32.totalorder %s84, 15
          %s86 = scalar_select %p85, %s84, 15
          %s87 = smul.addr %s86, 8
          %s88 = scalar_lea.vmem %s0, %s87
          %s89 = smul.u32 8, %s10
        $region20: #{tpu_custom_call.1} parent=15 // pred_fallthru
          _
      $region16: #{tpu_custom_call.1} parent=5 // pred_fallthru
        _
      %p90 = scmp.le.s32.totalorder 1, %s10
      %p91 = scmp.lt.s32.totalorder %s10, 3
      %p92 = pnand %p90, %p91
      %p93 = pneg %p92
      // Predicated region
      $region21: #{tpu_custom_call.1} parent=5 // pred_check
        _
      $region22: #{tpu_custom_call.1} parent=5 // pred_check_branch
        %95 = sbr.rel (%p92) target = $region24
      $region23: #{tpu_custom_call.1} parent=5 // pred_region
        %s96 = ssub.s32 %s10, 1
        %s97 = smul.u32 8, %s15
        %p98 = scmp.lt.s32.totalorder %s97, 15
        %s99 = scalar_select %p98, %s97, 15
        %s100 = smul.addr %s99, 8
        %s101 = scalar_lea.vmem %s0, %s100
        %p102 = pneg %p36
        %p103 = pneg %p33
        %p104 = pneg %p62
        %p105 = pneg %p59
        %s106 = sand.u32 %s49, 1
        %s107 = scalar_lea.sflag [#allocation3], %s106
        %s108 = sand.u32 %s49, 1
        %s109 = smul.addr %s108, 8
        %s110 = scalar_lea.vmem [#allocation2], %s109
        %s111 = smul.u32 8, %s15
        %p112 = scmp.lt.s32.totalorder %s111, 15
        %s113 = scalar_select %p112, %s111, 15
        %s114 = smul.addr %s113, 8
        %s115 = scalar_lea.vmem %s0, %s114
        %s116 = smul.u32 8, %s15
        %v117 = vld [vmem:[%s115] sm:$0xff]
        %v118 = vld [vmem:[%s115 + $0x8] sm:$0xff]
        %v119 = vld [vmem:[%s115 + $0x10] sm:$0xff]
        %v120 = vld [vmem:[%s115 + $0x18] sm:$0xff]
        %v121 = vld [vmem:[%s115 + $0x20] sm:$0xff]
        %v122 = vld [vmem:[%s115 + $0x28] sm:$0xff]
        %v123 = vld [vmem:[%s115 + $0x30] sm:$0xff]
        %v124 = vld [vmem:[%s115 + $0x38] sm:$0xff]
        %vm133 = vcmask 1040384
        %v134 = vrot.slane %v117, 7
        %v135 = vrot.slane %v118, 7
        %v136 = vsel %vm133, %v134, %v135
        %v137 = vrot.slane %v119, 7
        %v138 = vsel %vm133, %v135, %v137
        %v139 = vrot.slane %v120, 7
        %v140 = vsel %vm133, %v137, %v139
        %v141 = vrot.slane %v121, 7
        %v142 = vsel %vm133, %v139, %v141
        %v143 = vrot.slane %v122, 7
        %v144 = vsel %vm133, %v141, %v143
        %v145 = vrot.slane %v123, 7
        %v146 = vsel %vm133, %v143, %v145
        %v147 = vrot.slane %v124, 7
        %v148 = vsel %vm133, %v145, %v147
        %v157 = vsub.f32 %v117, %v134
        %v158 = vsub.f32 %v118, %v136
        %v159 = vsub.f32 %v119, %v138
        %v160 = vsub.f32 %v120, %v140
        %v161 = vsub.f32 %v121, %v142
        %v162 = vsub.f32 %v122, %v144
        %v163 = vsub.f32 %v123, %v146
        %v164 = vsub.f32 %v124, %v148
        %v165 = vlaneseq
        %v166 = vshrl.u32 %v165, 7
        %v167 = vadd.s32 %v166, 8
        %v168 = vadd.s32 %v166, 16
        %v169 = vadd.s32 %v166, 24
        %v170 = vadd.s32 %v166, 32
        %v171 = vadd.s32 %v166, 40
        %v172 = vadd.s32 %v166, 48
        %v173 = vadd.s32 %v166, 56
        %vm174 = vcmp.lt.s32.totalorder %v166, 0
        %v175 = vsub.s32 0, %v166
        %v176 = vsel %vm174, %v175, %v166
        %v177 = vshrl.u32 %v176, 4
        %v178 = vand.u32 %v176, 15
        %v179 = vsub.s32 0, %v178
        %v180 = vsel %vm174, %v179, %v178
        %vm181 = vcmp.lt.s32.totalorder %v167, 0
        %v182 = vsub.s32 0, %v167
        %v183 = vsel %vm181, %v182, %v167
        %v184 = vshrl.u32 %v183, 4
        %v185 = vand.u32 %v183, 15
        %v186 = vsub.s32 0, %v185
        %v187 = vsel %vm181, %v186, %v185
        %vm188 = vcmp.lt.s32.totalorder %v168, 0
        %v189 = vsub.s32 0, %v168
        %v190 = vsel %vm188, %v189, %v168
        %v191 = vshrl.u32 %v190, 4
        %v192 = vand.u32 %v190, 15
        %v193 = vsub.s32 0, %v192
        %v194 = vsel %vm188, %v193, %v192
        %vm195 = vcmp.lt.s32.totalorder %v169, 0
        %v196 = vsub.s32 0, %v169
        %v197 = vsel %vm195, %v196, %v169
        %v198 = vshrl.u32 %v197, 4
        %v199 = vand.u32 %v197, 15
        %v200 = vsub.s32 0, %v199
        %v201 = vsel %vm195, %v200, %v199
        %vm202 = vcmp.lt.s32.totalorder %v170, 0
        %v203 = vsub.s32 0, %v170
        %v204 = vsel %vm202, %v203, %v170
        %v205 = vshrl.u32 %v204, 4
        %v206 = vand.u32 %v204, 15
        %v207 = vsub.s32 0, %v206
        %v208 = vsel %vm202, %v207, %v206
        %vm209 = vcmp.lt.s32.totalorder %v171, 0
        %v210 = vsub.s32 0, %v171
        %v211 = vsel %vm209, %v210, %v171
        %v212 = vshrl.u32 %v211, 4
        %v213 = vand.u32 %v211, 15
        %v214 = vsub.s32 0, %v213
        %v215 = vsel %vm209, %v214, %v213
        %vm216 = vcmp.lt.s32.totalorder %v172, 0
        %v217 = vsub.s32 0, %v172
        %v218 = vsel %vm216, %v217, %v172
        %v219 = vshrl.u32 %v218, 4
        %v220 = vand.u32 %v218, 15
        %v221 = vsub.s32 0, %v220
        %v222 = vsel %vm216, %v221, %v220
        %vm223 = vcmp.lt.s32.totalorder %v173, 0
        %v224 = vsub.s32 0, %v173
        %v225 = vsel %vm223, %v224, %v173
        %v226 = vshrl.u32 %v225, 4
        %v227 = vand.u32 %v225, 15
        %v228 = vsub.s32 0, %v227
        %v229 = vsel %vm223, %v228, %v227
        %vm230 = vcmp.ne.s32.totalorder %v180, 0
        %vm231 = vcmp.ne.s32.totalorder %v187, 0
        %vm232 = vcmp.ne.s32.totalorder %v194, 0
        %vm233 = vcmp.ne.s32.totalorder %v201, 0
        %vm234 = vcmp.ne.s32.totalorder %v208, 0
        %vm235 = vcmp.ne.s32.totalorder %v215, 0
        %vm236 = vcmp.ne.s32.totalorder %v222, 0
        %vm237 = vcmp.ne.s32.totalorder %v229, 0
        %vm238 = vcmp.lt.s32.totalorder %v180, 0
        %vm239 = vcmp.lt.s32.totalorder %v187, 0
        %vm240 = vcmp.lt.s32.totalorder %v194, 0
        %vm241 = vcmp.lt.s32.totalorder %v201, 0
        %vm242 = vcmp.lt.s32.totalorder %v208, 0
        %vm243 = vcmp.lt.s32.totalorder %v215, 0
        %vm244 = vcmp.lt.s32.totalorder %v222, 0
        %vm245 = vcmp.lt.s32.totalorder %v229, 0
        %vm246 = vmand %vm238, %vm230
        %vm247 = vmand %vm239, %vm231
        %vm248 = vmand %vm240, %vm232
        %vm249 = vmand %vm241, %vm233
        %vm250 = vmand %vm242, %vm234
        %vm251 = vmand %vm243, %vm235
        %vm252 = vmand %vm244, %vm236
        %vm253 = vmand %vm245, %vm237
        %v254 = vadd.s32 %v180, 16
        %v255 = vadd.s32 %v187, 16
        %v256 = vadd.s32 %v194, 16
        %v257 = vadd.s32 %v201, 16
        %v258 = vadd.s32 %v208, 16
        %v259 = vadd.s32 %v215, 16
        %v260 = vadd.s32 %v222, 16
        %v261 = vadd.s32 %v229, 16
        %v262 = vsel %vm246, %v254, %v180
        %v263 = vsel %vm247, %v255, %v187
        %v264 = vsel %vm248, %v256, %v194
        %v265 = vsel %vm249, %v257, %v201
        %v266 = vsel %vm250, %v258, %v208
        %v267 = vsel %vm251, %v259, %v215
        %v268 = vsel %vm252, %v260, %v222
        %v269 = vsel %vm253, %v261, %v229
        %vm270 = vcmp.ne.s32.totalorder %v262, 15
        %vm271 = vcmp.ne.s32.totalorder %v263, 15
        %vm272 = vcmp.ne.s32.totalorder %v264, 15
        %vm273 = vcmp.ne.s32.totalorder %v265, 15
        %vm274 = vcmp.ne.s32.totalorder %v266, 15
        %vm275 = vcmp.ne.s32.totalorder %v267, 15
        %vm276 = vcmp.ne.s32.totalorder %v268, 15
        %vm277 = vcmp.ne.s32.totalorder %v269, 15
        %vm286 = vcmask 1046528
        %v287 = vrot.slane %v157, 1
        %v288 = vrot.slane %v158, 1
        %v289 = vsel %vm286, %v287, %v288
        %v290 = vrot.slane %v159, 1
        %v291 = vsel %vm286, %v288, %v290
        %v292 = vrot.slane %v160, 1
        %v293 = vsel %vm286, %v290, %v292
        %v294 = vrot.slane %v161, 1
        %v295 = vsel %vm286, %v292, %v294
        %v296 = vrot.slane %v162, 1
        %v297 = vsel %vm286, %v294, %v296
        %v298 = vrot.slane %v163, 1
        %v299 = vsel %vm286, %v296, %v298
        %v300 = vrot.slane %v164, 1
        %v301 = vsel %vm286, %v298, %v300
        %v310 = vsel %vm270, %v289, 0.0
        %v311 = vsel %vm271, %v291, 0.0
        %v312 = vsel %vm272, %v293, 0.0
        %v313 = vsel %vm273, %v295, 0.0
        %v314 = vsel %vm274, %v297, 0.0
        %v315 = vsel %vm275, %v299, 0.0
        %v316 = vsel %vm276, %v301, 0.0
        %v317 = vsel %vm277, %v300, 0.0
        %v318 = vmul.f32 %v310, %v310
        %v319 = vmul.f32 %v311, %v311
        %v320 = vmul.f32 %v312, %v312
        %v321 = vmul.f32 %v313, %v313
        %v322 = vmul.f32 %v314, %v314
        %v323 = vmul.f32 %v315, %v315
        %v324 = vmul.f32 %v316, %v316
        %v325 = vmul.f32 %v317, %v317
        %vm326 = vcmask 130048
        %v327 = vsel %vm326, %v318, 0.0
        %v328 = vsel %vm326, %v319, 0.0
        %v329 = vadd.f32 %v327, %v328
        %v330 = vsel %vm326, %v320, 0.0
        %v331 = vadd.f32 %v329, %v330
        %v332 = vsel %vm326, %v321, 0.0
        %v333 = vadd.f32 %v331, %v332
        %v334 = vsel %vm326, %v322, 0.0
        %v335 = vadd.f32 %v333, %v334
        %v336 = vsel %vm326, %v323, 0.0
        %v337 = vadd.f32 %v335, %v336
        %v338 = vsel %vm326, %v324, 0.0
        %v339 = vadd.f32 %v337, %v338
        %vm340 = vcmask 129024
        %v341 = vsel %vm340, %v325, 0.0
        %v342 = vadd.f32 %v339, %v341
        %343 = vadd.xlane.f32.xlu0 %v342
        %v344 = vpop.xlane.xlu0 %343
        %v345 = vrot.slane %v344, 4
        %v346 = vadd.f32 %v344, %v345
        %v347 = vrot.slane %v346, 2
        %v348 = vadd.f32 %v346, %v347
        %v349 = vrot.slane %v348, 1
        %v350 = vadd.f32 %v348, %v349
        %s351 = vtos %v350
        %352 = vrot.lane.b32.xlu0 %v117, 1
        %v353 = vpop.permute.xlu0 %352
        %354 = vrot.lane.b32.xlu0 %v118, 1
        %v355 = vpop.permute.xlu0 %354
        %356 = vrot.lane.b32.xlu0 %v119, 1
        %v357 = vpop.permute.xlu0 %356
        %358 = vrot.lane.b32.xlu0 %v120, 1
        %v359 = vpop.permute.xlu0 %358
        %360 = vrot.lane.b32.xlu0 %v121, 1
        %v361 = vpop.permute.xlu0 %360
        %362 = vrot.lane.b32.xlu0 %v122, 1
        %v363 = vpop.permute.xlu0 %362
        %364 = vrot.lane.b32.xlu0 %v123, 1
        %v365 = vpop.permute.xlu0 %364
        %366 = vrot.lane.b32.xlu0 %v124, 1
        %v367 = vpop.permute.xlu0 %366
        %v376 = vsub.f32 %v117, %v353
        %v377 = vsub.f32 %v118, %v355
        %v378 = vsub.f32 %v119, %v357
        %v379 = vsub.f32 %v120, %v359
        %v380 = vsub.f32 %v121, %v361
        %v381 = vsub.f32 %v122, %v363
        %v382 = vsub.f32 %v123, %v365
        %v383 = vsub.f32 %v124, %v367
        %v384 = vmul.f32 %v376, %v376
        %v385 = vmul.f32 %v377, %v377
        %v386 = vmul.f32 %v378, %v378
        %v387 = vmul.f32 %v379, %v379
        %v388 = vmul.f32 %v380, %v380
        %v389 = vmul.f32 %v381, %v381
        %v390 = vmul.f32 %v382, %v382
        %v391 = vmul.f32 %v383, %v383
        %400 = vrot.lane.b32.xlu0 %v384, 127
        %v401 = vpop.permute.xlu0 %400
        %402 = vrot.lane.b32.xlu0 %v385, 127
        %v403 = vpop.permute.xlu0 %402
        %404 = vrot.lane.b32.xlu0 %v386, 127
        %v405 = vpop.permute.xlu0 %404
        %406 = vrot.lane.b32.xlu0 %v387, 127
        %v407 = vpop.permute.xlu0 %406
        %408 = vrot.lane.b32.xlu0 %v388, 127
        %v409 = vpop.permute.xlu0 %408
        %410 = vrot.lane.b32.xlu0 %v389, 127
        %v411 = vpop.permute.xlu0 %410
        %412 = vrot.lane.b32.xlu0 %v390, 127
        %v413 = vpop.permute.xlu0 %412
        %414 = vrot.lane.b32.xlu0 %v391, 127
        %v415 = vpop.permute.xlu0 %414
        %vm424 = vcmask 121856
        %v425 = vsel %vm424, %v401, 0.0
        %v426 = vsel %vm424, %v403, 0.0
        %v427 = vadd.f32 %v425, %v426
        %v428 = vsel %vm424, %v405, 0.0
        %v429 = vadd.f32 %v427, %v428
        %v430 = vsel %vm424, %v407, 0.0
        %v431 = vadd.f32 %v429, %v430
        %v432 = vsel %vm424, %v409, 0.0
        %v433 = vadd.f32 %v431, %v432
        %v434 = vsel %vm424, %v411, 0.0
        %v435 = vadd.f32 %v433, %v434
        %v436 = vsel %vm424, %v413, 0.0
        %v437 = vadd.f32 %v435, %v436
        %v438 = vsel %vm424, %v415, 0.0
        %v439 = vadd.f32 %v437, %v438
        %440 = vadd.xlane.f32.xlu0 %v439
        %v441 = vpop.xlane.xlu0 %440
        %v442 = vrot.slane %v441, 4
        %v443 = vadd.f32 %v441, %v442
        %v444 = vrot.slane %v443, 2
        %v445 = vadd.f32 %v443, %v444
        %v446 = vrot.slane %v445, 1
        %v447 = vadd.f32 %v445, %v446
        %s448 = vtos %v447
        %v449 = vlaneseq
        %v450 = vand.u32 %v449, 127
        %vm451 = vcmp.eq.s32.totalorder %v450, 0
        %vm452 = vcmp.eq.s32.totalorder %v450, 1
        %v453 = vstv %s448
        %v454 = vsel %vm452, %v453, 0.0
        %v455 = vstv %s351
        %v456 = vsel %vm451, %v455, %v454
        %457 = vst [vmem:[%s110] sm:$0xff] %v456
        %s458 = sand.u32 %s49, 1
        %s459 = scalar_lea.sflag [#allocation3], %s458
        %s460 = sand.u32 %s49, 1
        %s461 = smul.addr %s460, 8
        %s462 = scalar_lea.vmem [#allocation2], %s461
        // Predicated region
        $region25: #{tpu_custom_call.1} parent=23 // pred_check
          %p463 = pneg %p59
        $region26: #{tpu_custom_call.1} parent=23 // pred_check_branch
          %465 = sbr.rel (%p463) target = $region28
        $region27: #{tpu_custom_call.1} parent=23 // pred_region
          %s467 = ssub.s32 128, 128
          %468 = vsyncadd %s459, %s467
          %s469 = smul.addr %s15, 128
          %s470 = scalar_lea.hbm %s1, %s469
          %s472 = sshll.u32 %s462, 4
          %s473 = int_to_ptr.vmem [resolvable:$true] %s472
          %475 = dma.vmem_to_hbm [thread:$0]  %s473, 128, %s470, %s459
        $region28: #{tpu_custom_call.1} parent=23 // pred_fallthru
          _
      $region24: #{tpu_custom_call.1} parent=5 // pred_fallthru
        _
      %p476 = scmp.le.s32.totalorder 2, %s10
      // Predicated region
      $region29: #{tpu_custom_call.1} parent=5 // pred_check
        %p477 = pneg %p476
      $region30: #{tpu_custom_call.1} parent=5 // pred_check_branch
        %479 = sbr.rel (%p477) target = $region32
      $region31: #{tpu_custom_call.1} parent=5 // pred_region
        %s480 = ssub.s32 %s10, 2
        // Predicated region
        $region33: #{tpu_custom_call.1} parent=31 // pred_check
          %p481 = pneg %p65
        $region34: #{tpu_custom_call.1} parent=31 // pred_check_branch
          %483 = sbr.rel (%p481) target = $region36
        $region35: #{tpu_custom_call.1} parent=31 // pred_region
          %s484 = sand.u32 %s50, 1
          %s485 = scalar_lea.sflag [#allocation3], %s484
          %s486 = sand.u32 %s50, 1
          %s487 = smul.addr %s486, 8
          %s488 = scalar_lea.vmem [#allocation2], %s487
          %489 = dma.done %s485, 128
        $region36: #{tpu_custom_call.1} parent=31 // pred_fallthru
          _
      $region32: #{tpu_custom_call.1} parent=5 // pred_fallthru
        _
    $region6: #{tpu_custom_call.1} parent=1 // loop_footer
      %s14 = sadd.s32 1, %s10
    $region7: #{tpu_custom_call.1} parent=1 // loop_footer_branch
      %9 = sbr.rel target = $region3
    $region8: #{tpu_custom_call.1} parent=1 // loop_exit
      _
    %490 = vsyncpa [#allocation3], 1
    %s491 = scalar_lea.sflag [#allocation3], 1
    %492 = vsyncpa %s491, 1

</llo_original>
